<compile_context>
chip_gen: v5e
topology: v5e:2x2
jax: 0.10.0
libtpu: 0.0.40
codegen_flags: <defaults>
</compile_context>

<pallas_src>
import jax
import jax.numpy as jnp
from jax.experimental import pallas as pl
from jax.experimental.pallas import tpu as pltpu

IN_DIM = 10
HIDDEN = 50
OUT_DIM = 1


def _round_up(n: int, m: int) -> int:
    return ((n + m - 1) // m) * m


def mlp_kernel(xt_ref, w1_ref, b1_ref, w2_ref, b2_ref, o_ref):
    # xt_ref: (IN_DIM, TB) feature-major tile (lane axis = batch)
    # w1_ref: (HIDDEN, IN_DIM)  b1_ref: (HIDDEN, 1)
    # w2_ref: (HIDDEN, 1)       b2_ref: (1, 1)
    # o_ref : (1, TB) lane-dense output slab
    # fc1 on the MXU, f32 accumulate: (HIDDEN, IN_DIM) @ (IN_DIM, TB) -> (HIDDEN, TB)
    h = jnp.dot(w1_ref[...], xt_ref[...], preferred_element_type=jnp.float32)
    # bias + ReLU on the VPU; biases are resident blocks (loaded once, reused).
    h = jnp.maximum(h + b1_ref[...], 0.0)
    # fc2 (output width 1): VPU multiply + XLU sublane reduction instead of a
    # 1-of-128/256-column MXU matmul.
    y = jnp.sum(h * w2_ref[...], axis=0, keepdims=True) + b2_ref[...]  # (1, TB)
    o_ref[...] = y.astype(o_ref.dtype)


def mlp_forward(x, w1, b1, w2, b2, *, block_b=1024):
    """Forward pass matching PyTorch MyModel.

    x : (B, IN_DIM) row-major (PyTorch convention)
    w1: (HIDDEN, IN_DIM), b1: (HIDDEN,)   -- native nn.Linear layout
    w2: (OUT_DIM, HIDDEN), b2: (OUT_DIM,)
    returns (B, OUT_DIM)
    """
    B = x.shape[0]
    # Lane-dense batch tile: multiple of 128 lanes, capped by the (padded) batch.
    block_b = _round_up(max(int(block_b), 128), 128)
    tb = min(block_b, _round_up(B, 128))
    Bp = _round_up(B, tb)
    num_tiles = Bp // tb

    # Layout plumbing outside the kernel: batch onto the lane axis, pad it.
    xt = jnp.pad(x, ((0, Bp - B), (0, 0))).T          # (IN_DIM, Bp)
    b1c = b1.reshape(HIDDEN, 1)                       # column: broadcasts over lanes
    w2c = w2.reshape(OUT_DIM, HIDDEN).T               # (HIDDEN, 1) column
    b2c = b2.reshape(1, OUT_DIM)                      # (1, 1)

    flops = 2 * Bp * (IN_DIM * HIDDEN + HIDDEN * OUT_DIM)
    bytes_accessed = 4 * (
        Bp * IN_DIM + Bp * OUT_DIM
        + HIDDEN * IN_DIM + HIDDEN + HIDDEN * OUT_DIM + OUT_DIM
    )

    out = pl.pallas_call(
        mlp_kernel,
        out_shape=jax.ShapeDtypeStruct((OUT_DIM, Bp), x.dtype),
        grid=(num_tiles,),
        in_specs=[
            # Streamed, auto double-buffered batch tile of x.
            pl.BlockSpec((IN_DIM, tb), lambda i: (0, i)),
            # Weights / biases: full-array blocks pinned to (0, 0) -> VMEM residents.
            pl.BlockSpec((HIDDEN, IN_DIM), lambda i: (0, 0)),
            pl.BlockSpec((HIDDEN, 1), lambda i: (0, 0)),
            pl.BlockSpec((HIDDEN, OUT_DIM), lambda i: (0, 0)),
            pl.BlockSpec((1, OUT_DIM), lambda i: (0, 0)),
        ],
        # Lane-dense output slab per tile.
        out_specs=pl.BlockSpec((OUT_DIM, tb), lambda i: (0, i)),
        compiler_params=pltpu.CompilerParams(
            dimension_semantics=("parallel",),
        ),
        cost_estimate=pl.CostEstimate(
            flops=flops, transcendentals=0, bytes_accessed=bytes_accessed
        ),
    )(xt, w1, b1c, w2c, b2c)

    # (1, Bp) and (Bp, 1) share the same linear order: free reshape, drop padding.
    return out.reshape(Bp, OUT_DIM)[:B]


def init_params(key):
    # Deterministic init mimicking nn.Linear's uniform(-1/sqrt(fan_in), 1/sqrt(fan_in)),
    # stored in native PyTorch layout: weight = (out_features, in_features).
    k1, k2, k3, k4 = jax.random.split(key, 4)
    lim1 = 1.0 / (IN_DIM ** 0.5)
    lim2 = 1.0 / (HIDDEN ** 0.5)
    w1 = jax.random.uniform(k1, (HIDDEN, IN_DIM), jnp.float32, -lim1, lim1)
    b1 = jax.random.uniform(k2, (HIDDEN,), jnp.float32, -lim1, lim1)
    w2 = jax.random.uniform(k3, (OUT_DIM, HIDDEN), jnp.float32, -lim2, lim2)
    b2 = jax.random.uniform(k4, (OUT_DIM,), jnp.float32, -lim2, lim2)
    return w1, b1, w2, b2


if __name__ == "__main__":
    key = jax.random.PRNGKey(0)
    kx, kp = jax.random.split(key)

    # Small demo batch; 200 is deliberately NOT a multiple of the tile so the
    # padded, 2-step grid path is exercised.
    B = 200
    x = jax.random.normal(kx, (B, IN_DIM), jnp.float32)
    w1, b1, w2, b2 = init_params(kp)

    out = mlp_forward(x, w1, b1, w2, b2, block_b=128)
    out = jax.block_until_ready(out)

    # Pure-JAX reference (PyTorch semantics: x @ W.T + b).
    ref = jnp.maximum(x @ w1.T + b1, 0.0) @ w2.T + b2
    assert out.shape == (B, OUT_DIM), out.shape
    assert jnp.allclose(out, ref, atol=1e-4, rtol=1e-4), float(
        jnp.max(jnp.abs(out - ref))
    )
    print("KERNEL_OK")
</pallas_src>

<mosaic_0001>
module attributes {stable_mosaic.version = 11 : i64} {
  func.func @mlp_kernel(%arg0: i32, %arg1: memref<10x128xf32, #tpu.memory_space<vmem>>, %arg2: memref<50x10xf32, #tpu.memory_space<vmem>>, %arg3: memref<50x1xf32, #tpu.memory_space<vmem>>, %arg4: memref<50x1xf32, #tpu.memory_space<vmem>>, %arg5: memref<1x1xf32, #tpu.memory_space<vmem>>, %arg6: memref<1x128xf32, #tpu.memory_space<vmem>>) attributes {dimension_semantics = [#tpu.dimension_semantics<parallel>], iteration_bounds = array<i64: 2>, scalar_prefetch = 0 : i64, scratch_operands = 0 : i64, tpu.core_type = #tpu.core_type<tc>, window_params = [{transform_indices = @transform_0, window_bounds = array<i64: 10, 128>}, {pipeline_mode = #tpu.pipeline_mode<synchronous>, transform_indices = @transform_1, window_bounds = array<i64: 50, 10>}, {pipeline_mode = #tpu.pipeline_mode<synchronous>, transform_indices = @transform_2, window_bounds = array<i64: 50, 1>}, {pipeline_mode = #tpu.pipeline_mode<synchronous>, transform_indices = @transform_3, window_bounds = array<i64: 50, 1>}, {pipeline_mode = #tpu.pipeline_mode<synchronous>, transform_indices = @transform_4, window_bounds = array<i64: 1, 1>}, {transform_indices = @transform_5, window_bounds = array<i64: 1, 128>}]} {
    %c0 = arith.constant 0 : index
    %c0_0 = arith.constant 0 : index
    %0 = vector.load %arg2[%c0, %c0_0] : memref<50x10xf32, #tpu.memory_space<vmem>>, vector<50x10xf32>
    %c0_1 = arith.constant 0 : index
    %c0_2 = arith.constant 0 : index
    %1 = vector.load %arg1[%c0_1, %c0_2] : memref<10x128xf32, #tpu.memory_space<vmem>>, vector<10x128xf32>
    %cst = arith.constant dense<0.000000e+00> : vector<50x128xf32>
    %2 = tpu.matmul %0, %1, %cst {dimension_numbers = #tpu.dot_dimension_numbers<[1], [0], [0], [1], [0, 0, 1, 1], [], []>} : vector<50x10xf32>, vector<10x128xf32>, vector<50x128xf32> -> vector<50x128xf32>
    %c0_3 = arith.constant 0 : index
    %c0_4 = arith.constant 0 : index
    %3 = vector.load %arg3[%c0_3, %c0_4] : memref<50x1xf32, #tpu.memory_space<vmem>>, vector<50x1xf32>
    %4 = vector.broadcast %3 : vector<50x1xf32> to vector<50x128xf32>
    %5 = arith.addf %2, %4 : vector<50x128xf32>
    %cst_5 = arith.constant 0.000000e+00 : f32
    %6 = vector.broadcast %cst_5 : f32 to vector<50x128xf32>
    %7 = arith.maximumf %5, %6 : vector<50x128xf32>
    %c0_6 = arith.constant 0 : index
    %c0_7 = arith.constant 0 : index
    %8 = vector.load %arg4[%c0_6, %c0_7] : memref<50x1xf32, #tpu.memory_space<vmem>>, vector<50x1xf32>
    %9 = vector.broadcast %8 : vector<50x1xf32> to vector<50x128xf32>
    %10 = arith.mulf %7, %9 : vector<50x128xf32>
    %cst_8 = arith.constant dense<0.000000e+00> : vector<128xf32>
    %11 = vector.multi_reduction <add>, %10, %cst_8 [0] : vector<50x128xf32> to vector<128xf32>
    %12 = vector.shape_cast %11 : vector<128xf32> to vector<1x128xf32>
    %c0_9 = arith.constant 0 : index
    %c0_10 = arith.constant 0 : index
    %13 = vector.load %arg5[%c0_9, %c0_10] : memref<1x1xf32, #tpu.memory_space<vmem>>, vector<1x1xf32>
    %14 = vector.broadcast %13 : vector<1x1xf32> to vector<1x128xf32>
    %15 = arith.addf %12, %14 : vector<1x128xf32>
    %c0_11 = arith.constant 0 : index
    %c0_12 = arith.constant 0 : index
    %16 = vector.load %arg6[%c0_11, %c0_12] : memref<1x128xf32, #tpu.memory_space<vmem>>, vector<1x128xf32>
    tpu.vector_store %arg6[%c0_11, %c0_12], %15 {strides = array<i32>} : memref<1x128xf32, #tpu.memory_space<vmem>>, vector<1x128xf32>,
    return
  }
  func.func @transform_0(%arg0: i32) -> (i32, i32) {
    %c0_i32 = arith.constant 0 : i32
    %c0_i32_0 = arith.constant 0 : i32
    return %c0_i32, %arg0 : i32, i32
  }
  func.func @transform_1(%arg0: i32) -> (i32, i32) {
    %c0_i32 = arith.constant 0 : i32
    %c0_i32_0 = arith.constant 0 : i32
    %c0_i32_1 = arith.constant 0 : i32
    return %c0_i32, %c0_i32_0 : i32, i32
  }
  func.func @transform_2(%arg0: i32) -> (i32, i32) {
    %c0_i32 = arith.constant 0 : i32
    %c0_i32_0 = arith.constant 0 : i32
    %c0_i32_1 = arith.constant 0 : i32
    return %c0_i32, %c0_i32_0 : i32, i32
  }
  func.func @transform_3(%arg0: i32) -> (i32, i32) {
    %c0_i32 = arith.constant 0 : i32
    %c0_i32_0 = arith.constant 0 : i32
    %c0_i32_1 = arith.constant 0 : i32
    return %c0_i32, %c0_i32_0 : i32, i32
  }
  func.func @transform_4(%arg0: i32) -> (i32, i32) {
    %c0_i32 = arith.constant 0 : i32
    %c0_i32_0 = arith.constant 0 : i32
    %c0_i32_1 = arith.constant 0 : i32
    return %c0_i32, %c0_i32_0 : i32, i32
  }
  func.func @transform_5(%arg0: i32) -> (i32, i32) {
    %c0_i32 = arith.constant 0 : i32
    %c0_i32_0 = arith.constant 0 : i32
    return %c0_i32, %arg0 : i32, i32
  }
}

</mosaic_0001>

<llo_original>
// kernel: tpu_custom_call.1
$region0: #{tpu_custom_call.1}
  #allocation0 [shape = 'u32[]', space=smem, size = 0x4, offset = 0x4, fixed_abs, tag = 'smem constant byte address 0x4 - core index']
  #allocation1 [shape = 'u32[72,128]{1,0:T(1,128)}', space=vmem, size = 0x9000, scoped, tag = 'internal scratch']
  #allocation2 [shape = 'f32[1,1]{1,0:T(1,128)S(1)}', space=vmem, size = 0x200, scoped, tag = 'scoped memory for tpu_custom_call.1']
  %s0 = inlined_call_operand.vmem [shape: f32[10,256], index: 0, kind: input, shape index: {}]
  %s1 = inlined_call_operand.vmem [shape: f32[50,10], index: 1, kind: input, shape index: {}]
  %s2 = inlined_call_operand.vmem [shape: f32[50,1], index: 2, kind: input, shape index: {}]
  %s3 = inlined_call_operand.vmem [shape: f32[50,1], index: 3, kind: input, shape index: {}]
  %s4 = inlined_call_operand.<no memory space> [shape: f32[1,1], index: 4, kind: input, shape index: {}]
  %s5 = inlined_call_operand.hbm [shape: f32[1,256], index: 5, kind: output, shape index: {}]
  %s6 = sld [smem:[#allocation0]]
  $region91: #{tpu_custom_call.1} parent=0
    _
  %s8 = ssub.s32 1, %s6
  %s9 = scalar_select 0, %s8, %s6
  %v10 = vstv %s4
  %11 = vst [vmem:[#allocation2] sm:$0x1] %v10
  $region1: #{tpu_custom_call.1} parent=0
    #allocation3 [shape = 'u8[16384]{0}', space=vmem, size = 0x4000, scoped, tag = 'input window, operand 0']
    #allocation4 [shape = 'u8[1024]{0}', space=vmem, size = 0x400, scoped, tag = 'output window, operand 0']
    #allocation5 [shape = 's32[2]{0}', space=sflag, size = 0x8, scoped, tag = 'scoped memory for tpu_custom_call.1']
    %12 = vsyncpa [#allocation5], 0
    %s13 = scalar_lea.sflag [#allocation5], 1
    %14 = vsyncpa %s13, 0
    loop: start=0, step=1, limit=4
    $region2: #{tpu_custom_call.1} parent=1 // loop_pre_header
      _
    $region3: #{tpu_custom_call.1} parent=1 // loop_header
      %s16 = sphi 0, %s20
      %p17 = scmp.ge.s32.totalorder %s16, 4
      %s26 = sphi 0, %s28
      %s29 = sphi 0, %s26
      %s30 = sphi 0, %s29
      %s46 = sphi 0, %s30
      %s50 = sphi 0, %s50
      %s52 = sphi 0, %s50
      %s53 = sphi 0, %s52
      %s67 = sphi 0, %s53
      %s71 = sphi 0, %s71
      %s73 = sphi 0, %s71
      %s74 = sphi 0, %s73
      %s88 = sphi 0, %s74
      %s92 = sphi 0, %s92
      %s94 = sphi 0, %s92
      %s95 = sphi 0, %s94
      %s109 = sphi 0, %s95
      %s113 = sphi 0, %s113
      %s115 = sphi 0, %s113
      %s116 = sphi 0, %s115
      %s130 = sphi 0, %s116
      %s136 = sphi 0, %s138
      %s139 = sphi 0, %s136
      %s140 = sphi 0, %s139
      %s156 = sphi 0, %s140
    $region4: #{tpu_custom_call.1} parent=1 // loop_header_branch
      %19 = sbr.rel (%p17) target = $region8
    $region5: #{tpu_custom_call.1} parent=1 // loop_body
      %s21 = ssub.s32 %s16, 1
      %s22 = ssub.s32 %s16, 2
      %s23 = sadd.s32 %s16, 1
      %s24 = ssub.s32 %s16, %s23
      %p25 = scmp.eq.s32.totalorder %s24, 0
      %s27 = sadd.s32 %s26, 1
      %s28 = scalar_select %p25, %s26, %s27
      %p31 = pneg %p25
      %p32 = scmp.eq.s32.totalorder %s16, 1
      %p33 = por %p31, %p32
      %p34 = scmp.ne.s32.totalorder %s26, %s29
      %p35 = scmp.eq.s32.totalorder %s16, 0
      %p36 = por %p34, %p35
      %p37 = scmp.ne.s32.totalorder %s26, %s29
      %p38 = scmp.eq.s32.totalorder %s21, 1
      %p39 = por %p37, %p38
      %p40 = scmp.ne.s32.totalorder %s29, %s30
      %p41 = scmp.eq.s32.totalorder %s21, 0
      %p42 = por %p40, %p41
      %p43 = scmp.ne.s32.totalorder %s29, %s30
      %p44 = scmp.eq.s32.totalorder %s22, 1
      %p45 = por %p43, %p44
      %p47 = scmp.ne.s32.totalorder %s30, %s46
      %p48 = scmp.eq.s32.totalorder %s22, 0
      %p49 = por %p47, %p48
      %s51 = sadd.s32 %s50, 1
      %p54 = scmp.eq.s32.totalorder %s16, 1
      %p55 = scmp.ne.s32.totalorder %s50, %s52
      %p56 = scmp.eq.s32.totalorder %s16, 0
      %p57 = por %p55, %p56
      %p58 = scmp.ne.s32.totalorder %s50, %s52
      %p59 = scmp.eq.s32.totalorder %s21, 1
      %p60 = por %p58, %p59
      %p61 = scmp.ne.s32.totalorder %s52, %s53
      %p62 = scmp.eq.s32.totalorder %s21, 0
      %p63 = por %p61, %p62
      %p64 = scmp.ne.s32.totalorder %s52, %s53
      %p65 = scmp.eq.s32.totalorder %s22, 1
      %p66 = por %p64, %p65
      %p68 = scmp.ne.s32.totalorder %s53, %s67
      %p69 = scmp.eq.s32.totalorder %s22, 0
      %p70 = por %p68, %p69
      %s72 = sadd.s32 %s71, 1
      %p75 = scmp.eq.s32.totalorder %s16, 1
      %p76 = scmp.ne.s32.totalorder %s71, %s73
      %p77 = scmp.eq.s32.totalorder %s16, 0
      %p78 = por %p76, %p77
      %p79 = scmp.ne.s32.totalorder %s71, %s73
      %p80 = scmp.eq.s32.totalorder %s21, 1
      %p81 = por %p79, %p80
      %p82 = scmp.ne.s32.totalorder %s73, %s74
      %p83 = scmp.eq.s32.totalorder %s21, 0
      %p84 = por %p82, %p83
      %p85 = scmp.ne.s32.totalorder %s73, %s74
      %p86 = scmp.eq.s32.totalorder %s22, 1
      %p87 = por %p85, %p86
      %p89 = scmp.ne.s32.totalorder %s74, %s88
      %p90 = scmp.eq.s32.totalorder %s22, 0
      %p91 = por %p89, %p90
      %s93 = sadd.s32 %s92, 1
      %p96 = scmp.eq.s32.totalorder %s16, 1
      %p97 = scmp.ne.s32.totalorder %s92, %s94
      %p98 = scmp.eq.s32.totalorder %s16, 0
      %p99 = por %p97, %p98
      %p100 = scmp.ne.s32.totalorder %s92, %s94
      %p101 = scmp.eq.s32.totalorder %s21, 1
      %p102 = por %p100, %p101
      %p103 = scmp.ne.s32.totalorder %s94, %s95
      %p104 = scmp.eq.s32.totalorder %s21, 0
      %p105 = por %p103, %p104
      %p106 = scmp.ne.s32.totalorder %s94, %s95
      %p107 = scmp.eq.s32.totalorder %s22, 1
      %p108 = por %p106, %p107
      %p110 = scmp.ne.s32.totalorder %s95, %s109
      %p111 = scmp.eq.s32.totalorder %s22, 0
      %p112 = por %p110, %p111
      %s114 = sadd.s32 %s113, 1
      %p117 = scmp.eq.s32.totalorder %s16, 1
      %p118 = scmp.ne.s32.totalorder %s113, %s115
      %p119 = scmp.eq.s32.totalorder %s16, 0
      %p120 = por %p118, %p119
      %p121 = scmp.ne.s32.totalorder %s113, %s115
      %p122 = scmp.eq.s32.totalorder %s21, 1
      %p123 = por %p121, %p122
      %p124 = scmp.ne.s32.totalorder %s115, %s116
      %p125 = scmp.eq.s32.totalorder %s21, 0
      %p126 = por %p124, %p125
      %p127 = scmp.ne.s32.totalorder %s115, %s116
      %p128 = scmp.eq.s32.totalorder %s22, 1
      %p129 = por %p127, %p128
      %p131 = scmp.ne.s32.totalorder %s116, %s130
      %p132 = scmp.eq.s32.totalorder %s22, 0
      %p133 = por %p131, %p132
      %s134 = ssub.s32 %s16, %s23
      %p135 = scmp.eq.s32.totalorder %s134, 0
      %s137 = sadd.s32 %s136, 1
      %s138 = scalar_select %p135, %s136, %s137
      %p141 = pneg %p135
      %p142 = scmp.eq.s32.totalorder %s16, 1
      %p143 = por %p141, %p142
      %p144 = scmp.ne.s32.totalorder %s136, %s139
      %p145 = scmp.eq.s32.totalorder %s16, 0
      %p146 = por %p144, %p145
      %p147 = scmp.ne.s32.totalorder %s136, %s139
      %p148 = scmp.eq.s32.totalorder %s21, 1
      %p149 = por %p147, %p148
      %p150 = scmp.ne.s32.totalorder %s139, %s140
      %p151 = scmp.eq.s32.totalorder %s21, 0
      %p152 = por %p150, %p151
      %p153 = scmp.ne.s32.totalorder %s139, %s140
      %p154 = scmp.eq.s32.totalorder %s22, 1
      %p155 = por %p153, %p154
      %p157 = scmp.ne.s32.totalorder %s140, %s156
      %p158 = scmp.eq.s32.totalorder %s22, 0
      %p159 = por %p157, %p158
      %p160 = scmp.le.s32.totalorder 1, %s16
      %p161 = scmp.lt.s32.totalorder %s16, 3
      %p162 = pnand %p160, %p161
      %p163 = pneg %p162
      // Predicated region
      $region9: #{tpu_custom_call.1} parent=5 // pred_check
        _
      $region10: #{tpu_custom_call.1} parent=5 // pred_check_branch
        %165 = sbr.rel (%p162) target = $region12
      $region11: #{tpu_custom_call.1} parent=5 // pred_region
        %s166 = ssub.s32 %s16, 1
        // Predicated region
        $region13: #{tpu_custom_call.1} parent=11 // pred_check
          %p167 = pneg %p63
        $region14: #{tpu_custom_call.1} parent=11 // pred_check_branch
          %169 = sbr.rel (%p167) target = $region16
        $region15: #{tpu_custom_call.1} parent=11 // pred_region
          _
        $region16: #{tpu_custom_call.1} parent=11 // pred_fallthru
          _
        // Predicated region
        $region17: #{tpu_custom_call.1} parent=11 // pred_check
          %p170 = pneg %p84
        $region18: #{tpu_custom_call.1} parent=11 // pred_check_branch
          %172 = sbr.rel (%p170) target = $region20
        $region19: #{tpu_custom_call.1} parent=11 // pred_region
          _
        $region20: #{tpu_custom_call.1} parent=11 // pred_fallthru
          _
        // Predicated region
        $region21: #{tpu_custom_call.1} parent=11 // pred_check
          %p173 = pneg %p105
        $region22: #{tpu_custom_call.1} parent=11 // pred_check_branch
          %175 = sbr.rel (%p173) target = $region24
        $region23: #{tpu_custom_call.1} parent=11 // pred_region
          _
        $region24: #{tpu_custom_call.1} parent=11 // pred_fallthru
          _
        // Predicated region
        $region25: #{tpu_custom_call.1} parent=11 // pred_check
          %p176 = pneg %p126
        $region26: #{tpu_custom_call.1} parent=11 // pred_check_branch
          %178 = sbr.rel (%p176) target = $region28
        $region27: #{tpu_custom_call.1} parent=11 // pred_region
          _
        $region28: #{tpu_custom_call.1} parent=11 // pred_fallthru
          _
      $region12: #{tpu_custom_call.1} parent=5 // pred_fallthru
        _
      %p179 = scmp.lt.s32.totalorder %s16, 2
      // Predicated region
      $region29: #{tpu_custom_call.1} parent=5 // pred_check
        %p180 = pneg %p179
      $region30: #{tpu_custom_call.1} parent=5 // pred_check_branch
        %182 = sbr.rel (%p180) target = $region32
      $region31: #{tpu_custom_call.1} parent=5 // pred_region
        // Predicated region
        $region33: #{tpu_custom_call.1} parent=31 // pred_check
          %p183 = pneg %p36
        $region34: #{tpu_custom_call.1} parent=31 // pred_check_branch
          %185 = sbr.rel (%p183) target = $region36
        $region35: #{tpu_custom_call.1} parent=31 // pred_region
          %s186 = sand.u32 %s26, 1
          %s187 = sand.u32 %s26, 1
          %s188 = smul.addr %s187, 16
          %s189 = scalar_lea.vmem [#allocation3], %s188
          %s190 = smul.addr %s16, 8
          %s191 = scalar_lea.vmem %s0, %s190
          // Predicated region
          $region37: #{tpu_custom_call.1} parent=35 // pred_check
            _
          $region38: #{tpu_custom_call.1} parent=35 // pred_check_branch
            %193 = sbr.rel (0) target = $region40
          $region39: #{tpu_custom_call.1} parent=35 // pred_region
            // Predicated region
            $region41: #{tpu_custom_call.1} parent=39 // pred_check
              _
            $region42: #{tpu_custom_call.1} parent=39 // pred_check_branch
              %195 = sbr.rel (0) target = $region44
            $region43: #{tpu_custom_call.1} parent=39 // pred_region
              // Predicated region
              $region56: #{tpu_custom_call.1} parent=43 // pred_check
                _
              $region57: #{tpu_custom_call.1} parent=43 // pred_check_branch
                %213 = sbr.rel (0) target = $region59
              $region58: #{tpu_custom_call.1} parent=43 // pred_region
                loop: start=0, step=1, limit=1
                $region60: #{tpu_custom_call.1} parent=58 // loop_pre_header
                  _
                $region61: #{tpu_custom_call.1} parent=58 // loop_header
                  %s215 = sphi 0, %s219
                  %p216 = scmp.ge.s32.totalorder %s215, 1
                  %s220 = sphi %s191, %s191
                  %s221 = sphi %s189, %s189
                $region62: #{tpu_custom_call.1} parent=58 // loop_header_branch
                  %218 = sbr.rel (%p216) target = $region66
                $region63: #{tpu_custom_call.1} parent=58 // loop_body
                  %v222 = vld [vmem:[%s220] sm:$0xff]
                  %223 = vst [vmem:[%s221] sm:$0xff] %v222
                  %v224 = vld [vmem:[%s220 + $0x10] sm:$0xff]
                  %225 = vst [vmem:[%s221 + $0x8] sm:$0xff] %v224
                $region64: #{tpu_custom_call.1} parent=58 // loop_footer
                  %s219 = sadd.s32 1, %s215
                $region65: #{tpu_custom_call.1} parent=58 // loop_footer_branch
                  %214 = sbr.rel target = $region61
                $region66: #{tpu_custom_call.1} parent=58 // loop_exit
                  _
              $region59: #{tpu_custom_call.1} parent=43 // pred_fallthru
                _
              // Predicated region
              $region67: #{tpu_custom_call.1} parent=43 // pred_check
                _
              $region68: #{tpu_custom_call.1} parent=43 // pred_check_branch
                %227 = sbr.rel target = $region70
              $region69: #{tpu_custom_call.1} parent=43 // pred_region
                _
              $region70: #{tpu_custom_call.1} parent=43 // pred_fallthru
                _
            $region44: #{tpu_custom_call.1} parent=39 // pred_fallthru
              _
            // Predicated region
            $region45: #{tpu_custom_call.1} parent=39 // pred_check
              _
            $region46: #{tpu_custom_call.1} parent=39 // pred_check_branch
              %197 = sbr.rel target = $region48
            $region47: #{tpu_custom_call.1} parent=39 // pred_region
              %s199 = ssub.s32 256, 1
              loop: start=0, step=1, limit=1
              $region49: #{tpu_custom_call.1} parent=47 // loop_pre_header
                _
              $region50: #{tpu_custom_call.1} parent=47 // loop_header
                %s201 = sphi 0, %s205
                %p202 = scmp.ge.s32.totalorder %s201, 1
                %s206 = sphi %s191, %s191
                %s207 = sphi %s189, %s189
              $region51: #{tpu_custom_call.1} parent=47 // loop_header_branch
                %204 = sbr.rel (%p202) target = $region55
              $region52: #{tpu_custom_call.1} parent=47 // loop_body
                %v208 = vld [vmem:[%s206] sm:%s199]
                %209 = vst [vmem:[%s207] sm:%s199] %v208
                %v210 = vld [vmem:[%s206 + $0x10] sm:%s199]
                %211 = vst [vmem:[%s207 + $0x8] sm:%s199] %v210
              $region53: #{tpu_custom_call.1} parent=47 // loop_footer
                %s205 = sadd.s32 1, %s201
              $region54: #{tpu_custom_call.1} parent=47 // loop_footer_branch
                %200 = sbr.rel target = $region50
              $region55: #{tpu_custom_call.1} parent=47 // loop_exit
                _
            $region48: #{tpu_custom_call.1} parent=39 // pred_fallthru
              _
          $region40: #{tpu_custom_call.1} parent=35 // pred_fallthru
            _
          %228 = vnop
        $region36: #{tpu_custom_call.1} parent=31 // pred_fallthru
          _
      $region32: #{tpu_custom_call.1} parent=5 // pred_fallthru
        _
      %p229 = scmp.le.s32.totalorder 1, %s16
      %p230 = scmp.lt.s32.totalorder %s16, 3
      %p231 = pnand %p229, %p230
      %p232 = pneg %p231
      // Predicated region
      $region71: #{tpu_custom_call.1} parent=5 // pred_check
        _
      $region72: #{tpu_custom_call.1} parent=5 // pred_check_branch
        %234 = sbr.rel (%p231) target = $region74
      $region73: #{tpu_custom_call.1} parent=5 // pred_region
        %s235 = ssub.s32 %s16, 1
        %s236 = sand.u32 %s29, 1
        %s237 = sand.u32 %s29, 1
        %s238 = smul.addr %s237, 16
        %s239 = scalar_lea.vmem [#allocation3], %s238
        // Predicated region
        $region75: #{tpu_custom_call.1} parent=73 // pred_check
          %p240 = pneg %p42
        $region76: #{tpu_custom_call.1} parent=73 // pred_check_branch
          %242 = sbr.rel (%p240) target = $region78
        $region77: #{tpu_custom_call.1} parent=73 // pred_region
          _
        $region78: #{tpu_custom_call.1} parent=73 // pred_fallthru
          _
        %s243 = sand.u32 %s29, 1
        %s244 = sand.u32 %s29, 1
        %s245 = smul.addr %s244, 16
        %s246 = scalar_lea.vmem [#allocation3], %s245
        %p247 = pneg %p42
        %p248 = pneg %p39
        %p249 = pneg %p63
        %p250 = pneg %p60
        %p251 = pneg %p84
        %p252 = pneg %p81
        %p253 = pneg %p105
        %p254 = pneg %p102
        %p255 = pneg %p126
        %p256 = pneg %p123
        %p257 = pneg %p152
        %p258 = pneg %p149
        %s259 = sand.u32 %s139, 1
        %s260 = scalar_lea.sflag [#allocation5], %s259
        %s261 = sand.u32 %s139, 1
        %s262 = scalar_lea.vmem [#allocation4], %s261
        %v263 = vld [vmem:[%s1] sm:$0xff]
        %v264 = vld [vmem:[%s1 + $0x8] sm:$0xff]
        %v265 = vld [vmem:[%s1 + $0x10] sm:$0xff]
        %v266 = vld [vmem:[%s1 + $0x18] sm:$0xff]
        %v267 = vld [vmem:[%s1 + $0x20] sm:$0xff]
        %v268 = vld [vmem:[%s1 + $0x28] sm:$0xff]
        %v269 = vld [vmem:[%s1 + $0x30] sm:$0x3]
        %v270 = vld [vmem:[%s239] sm:$0xff]
        %v271 = vld [vmem:[%s239 + $0x8] sm:$0x3]
        %v272 = vld [vmem:[%s2] sm:$0xff]
        %v273 = vld [vmem:[%s2 + $0x8] sm:$0xff]
        %v274 = vld [vmem:[%s2 + $0x10] sm:$0xff]
        %v275 = vld [vmem:[%s2 + $0x18] sm:$0xff]
        %v276 = vld [vmem:[%s2 + $0x20] sm:$0xff]
        %v277 = vld [vmem:[%s2 + $0x28] sm:$0xff]
        %v278 = vld [vmem:[%s2 + $0x30] sm:$0x3]
        %280 = vset.pattern.permute.xlu0 0
        %281 = vperm.xlu0 %280, %v272
        %v282 = vpop.permute.xlu0 %281
        %285 = vset.pattern.permute.xlu0 0
        %286 = vperm.xlu0 %285, %v273
        %v287 = vpop.permute.xlu0 %286
        %290 = vset.pattern.permute.xlu0 0
        %291 = vperm.xlu0 %290, %v274
        %v292 = vpop.permute.xlu0 %291
        %295 = vset.pattern.permute.xlu0 0
        %296 = vperm.xlu0 %295, %v275
        %v297 = vpop.permute.xlu0 %296
        %300 = vset.pattern.permute.xlu0 0
        %301 = vperm.xlu0 %300, %v276
        %v302 = vpop.permute.xlu0 %301
        %305 = vset.pattern.permute.xlu0 0
        %306 = vperm.xlu0 %305, %v277
        %v307 = vpop.permute.xlu0 %306
        %310 = vset.pattern.permute.xlu0 0
        %311 = vperm.xlu0 %310, %v278
        %v312 = vpop.permute.xlu0 %311
        %vm314 = vcmask 80896
        %v316 = vsel %vm314, %v263, 0
        %v319 = vsel %vm314, %v264, 0
        %v322 = vsel %vm314, %v265, 0
        %v325 = vsel %vm314, %v266, 0
        %v328 = vsel %vm314, %v267, 0
        %v331 = vsel %vm314, %v268, 0
        %v334 = vsel %vm314, %v269, 0
        %vm336 = vcmask 1041408
        %v338 = vsel %vm336, %v271, 0
        %340 = vmatpush.msra.mxu0 0.0
        %341 = vmatpush.msra.mxu0 0.0
        %342 = vmatpush.msra.mxu0 0.0
        %343 = vmatpush.msra.mxu0 0.0
        %344 = vmatpush.msra.mxu0 0.0
        %345 = vmatpush.msra.mxu0 0.0
        %346 = vmatpush.msra.mxu0 0.0
        %347 = vmatpush.msra.mxu0 0.0
        %348 = vmatpush.msra.mxu0 0.0
        %349 = vmatpush.msra.mxu0 0.0
        %350 = vmatpush.msra.mxu0 0.0
        %351 = vmatpush.msra.mxu0 0.0
        %352 = vmatpush.msra.mxu0 0.0
        %353 = vmatpush.msra.mxu0 0.0
        %354 = vmatpush.msra.mxu0 %v338
        %355 = vmatpush.msra.mxu0 %v270
        %356 = vmatmul.f32.gmra.mxu0 %v316
        %v357 = vpop.f32.mrf.mxu0
        %v358 = vadd.f32 %v282, %v357
        %359 = vmatmul.f32.gmra.mxu0 %v319
        %v360 = vpop.f32.mrf.mxu0
        %v361 = vadd.f32 %v287, %v360
        %362 = vmatmul.f32.gmra.mxu0 %v322
        %v363 = vpop.f32.mrf.mxu0
        %v364 = vadd.f32 %v292, %v363
        %365 = vmatmul.f32.gmra.mxu0 %v325
        %v366 = vpop.f32.mrf.mxu0
        %v367 = vadd.f32 %v297, %v366
        %368 = vmatmul.f32.gmra.mxu0 %v328
        %v369 = vpop.f32.mrf.mxu0
        %v370 = vadd.f32 %v302, %v369
        %371 = vmatmul.f32.gmra.mxu0 %v331
        %v372 = vpop.f32.mrf.mxu0
        %v373 = vadd.f32 %v307, %v372
        %374 = vmatmul.f32.gmra.mxu0 %v334
        %v375 = vpop.f32.mrf.mxu0
        %v376 = vadd.f32 %v312, %v375
        %377 = vdwg.mxu0
        %v378 = vmax.f32 %v358, 0.0
        %v379 = vmax.f32 %v361, 0.0
        %v380 = vmax.f32 %v364, 0.0
        %v381 = vmax.f32 %v367, 0.0
        %v382 = vmax.f32 %v370, 0.0
        %v383 = vmax.f32 %v373, 0.0
        %v384 = vmax.f32 %v376, 0.0
        %v385 = vld [vmem:[%s3] sm:$0xff]
        %v386 = vld [vmem:[%s3 + $0x8] sm:$0xff]
        %v387 = vld [vmem:[%s3 + $0x10] sm:$0xff]
        %v388 = vld [vmem:[%s3 + $0x18] sm:$0xff]
        %v389 = vld [vmem:[%s3 + $0x20] sm:$0xff]
        %v390 = vld [vmem:[%s3 + $0x28] sm:$0xff]
        %v391 = vld [vmem:[%s3 + $0x30] sm:$0x3]
        %393 = vset.pattern.permute.xlu0 0
        %394 = vperm.xlu0 %393, %v385
        %v395 = vpop.permute.xlu0 %394
        %398 = vset.pattern.permute.xlu0 0
        %399 = vperm.xlu0 %398, %v386
        %v400 = vpop.permute.xlu0 %399
        %403 = vset.pattern.permute.xlu0 0
        %404 = vperm.xlu0 %403, %v387
        %v405 = vpop.permute.xlu0 %404
        %408 = vset.pattern.permute.xlu0 0
        %409 = vperm.xlu0 %408, %v388
        %v410 = vpop.permute.xlu0 %409
        %413 = vset.pattern.permute.xlu0 0
        %414 = vperm.xlu0 %413, %v389
        %v415 = vpop.permute.xlu0 %414
        %418 = vset.pattern.permute.xlu0 0
        %419 = vperm.xlu0 %418, %v390
        %v420 = vpop.permute.xlu0 %419
        %423 = vset.pattern.permute.xlu0 0
        %424 = vperm.xlu0 %423, %v391
        %v425 = vpop.permute.xlu0 %424
        %v427 = vmul.f32 %v378, %v395
        %v428 = vmul.f32 %v379, %v400
        %v429 = vmul.f32 %v380, %v405
        %v430 = vmul.f32 %v381, %v410
        %v431 = vmul.f32 %v382, %v415
        %v432 = vmul.f32 %v383, %v420
        %v433 = vmul.f32 %v384, %v425
        %v434 = vadd.f32 %v427, %v428
        %v435 = vadd.f32 %v434, %v429
        %v436 = vadd.f32 %v435, %v430
        %v437 = vadd.f32 %v436, %v431
        %v438 = vadd.f32 %v437, %v432
        %v439 = vsel %vm336, %v433, 0.0
        %v440 = vadd.f32 %v438, %v439
        %v441 = vrot.slane %v440, 4
        %v442 = vadd.f32 %v440, %v441
        %v443 = vrot.slane %v442, 2
        %v444 = vadd.f32 %v442, %v443
        %v445 = vrot.slane %v444, 1
        %v446 = vadd.f32 %v444, %v445
        %v447 = vld [vmem:[#allocation2] sm:$0x1]
        %449 = vset.pattern.permute.xlu0 0
        %450 = vperm.xlu0 %449, %v447
        %v451 = vpop.permute.xlu0 %450
        %v453 = vperm.slane %v451, 0
        %v454 = vadd.f32 %v446, %v453
        %455 = vst [vmem:[%s262] sm:$0x1] %v454
        %s456 = sand.u32 %s139, 1
        %s457 = scalar_lea.sflag [#allocation5], %s456
        %s458 = sand.u32 %s139, 1
        %s459 = scalar_lea.vmem [#allocation4], %s458
        // Predicated region
        $region79: #{tpu_custom_call.1} parent=73 // pred_check
          %p460 = pneg %p149
        $region80: #{tpu_custom_call.1} parent=73 // pred_check_branch
          %462 = sbr.rel (%p460) target = $region82
        $region81: #{tpu_custom_call.1} parent=73 // pred_region
          %464 = vsyncadd %s457, 0
          %s465 = scalar_lea.hbm %s5, %s21
          %s467 = sshll.u32 %s459, 4
          %s468 = int_to_ptr.vmem [resolvable:$true] %s467
          %s469 = sshll.u32 %s465, 4
          %s470 = int_to_ptr.hbm [resolvable:$true] %s469
          %472 = dma.vmem_to_hbm [thread:$0]  %s468, 16, %s470, %s457
        $region82: #{tpu_custom_call.1} parent=73 // pred_fallthru
          _
      $region74: #{tpu_custom_call.1} parent=5 // pred_fallthru
        _
      %p473 = scmp.le.s32.totalorder 2, %s16
      // Predicated region
      $region83: #{tpu_custom_call.1} parent=5 // pred_check
        %p474 = pneg %p473
      $region84: #{tpu_custom_call.1} parent=5 // pred_check_branch
        %476 = sbr.rel (%p474) target = $region86
      $region85: #{tpu_custom_call.1} parent=5 // pred_region
        %s477 = ssub.s32 %s16, 2
        // Predicated region
        $region87: #{tpu_custom_call.1} parent=85 // pred_check
          %p478 = pneg %p155
        $region88: #{tpu_custom_call.1} parent=85 // pred_check_branch
          %480 = sbr.rel (%p478) target = $region90
        $region89: #{tpu_custom_call.1} parent=85 // pred_region
          %s481 = sand.u32 %s140, 1
          %s482 = scalar_lea.sflag [#allocation5], %s481
          %s483 = sand.u32 %s140, 1
          %s484 = scalar_lea.vmem [#allocation4], %s483
          %486 = dma.done %s482, 16
        $region90: #{tpu_custom_call.1} parent=85 // pred_fallthru
          _
      $region86: #{tpu_custom_call.1} parent=5 // pred_fallthru
        _
    $region6: #{tpu_custom_call.1} parent=1 // loop_footer
      %s20 = sadd.s32 1, %s16
    $region7: #{tpu_custom_call.1} parent=1 // loop_footer_branch
      %15 = sbr.rel target = $region3
    $region8: #{tpu_custom_call.1} parent=1 // loop_exit
      _
    %487 = vsyncpa [#allocation5], 1
    %s488 = scalar_lea.sflag [#allocation5], 1
    %489 = vsyncpa %s488, 1

</llo_original>
